<compile_context>
chip_gen: v6e
topology: v6e:2x2x1
jax: 0.10.0
libtpu: 0.0.40
codegen_flags: <defaults>
</compile_context>

<pallas_src>
import functools

import numpy as np
import jax
import jax.numpy as jnp
from jax.experimental import pallas as pl
from jax.experimental.pallas import tpu as pltpu

BN_EPS = 1e-5
BN_SCALE = float(1.0 / np.sqrt(1.0 + BN_EPS))  # eval-mode BN with fresh running stats


def _full_spec(shape):
    nd = len(shape)
    return pl.BlockSpec(shape, lambda *_: (0,) * nd)


def _pick_row_tile(n, max_tile=512):
    """Largest sublane-aligned row tile dividing n, capped for VMEM (v7x-safe)."""
    if n <= max_tile:
        return n
    for t in (512, 256, 128, 64, 32, 16, 8):
        if t <= max_tile and n % t == 0:
            return t
    return n


# ----------------------------------------------------------------------------
# Fused 2-layer MLP kernel:  Linear -> ReLU -> Linear [-> ReLU]
# (eval-mode BN already folded into w/b on the host; hidden dim lane-padded to 128)
# ----------------------------------------------------------------------------
def mlp2_kernel(x_ref, w1_ref, b1_ref, w2_ref, b2_ref, o_ref, *, relu_last):
    x = x_ref[...].astype(jnp.bfloat16)
    h = jnp.dot(x, w1_ref[...], preferred_element_type=jnp.float32) + b1_ref[...]
    h = jnp.maximum(h, 0.0)
    o = jnp.dot(h.astype(jnp.bfloat16), w2_ref[...],
                preferred_element_type=jnp.float32) + b2_ref[...]
    if relu_last:
        o = jnp.maximum(o, 0.0)
    o_ref[...] = o.astype(o_ref.dtype)


def mlp2(x, w1, b1, w2, b2, *, relu_last):
    N, Fin = x.shape
    H = w1.shape[1]
    Fout = w2.shape[1]

    # Lane-pad the hidden dim to 128: relu(0) = 0 and the padded rows of w2 are 0,
    # so this is numerically a no-op but keeps the intermediate lane-dense.
    Hp = ((H + 127) // 128) * 128
    if Hp != H:
        w1 = jnp.pad(w1, ((0, 0), (0, Hp - H)))
        b1 = jnp.pad(b1, ((0, 0), (0, Hp - H)))
        w2 = jnp.pad(w2, ((0, Hp - H), (0, 0)))
    w1b = w1.astype(jnp.bfloat16)
    w2b = w2.astype(jnp.bfloat16)

    tile = _pick_row_tile(N, max_tile=512)
    grid = (N // tile,)
    kernel = functools.partial(mlp2_kernel, relu_last=relu_last)
    return pl.pallas_call(
        kernel,
        out_shape=jax.ShapeDtypeStruct((N, Fout), jnp.float32),
        grid=grid,
        in_specs=[
            pl.BlockSpec((tile, Fin), lambda i: (i, 0)),
            pl.BlockSpec((Fin, Hp), lambda i: (0, 0)),
            pl.BlockSpec((1, Hp), lambda i: (0, 0)),
            pl.BlockSpec((Hp, Fout), lambda i: (0, 0)),
            pl.BlockSpec((1, Fout), lambda i: (0, 0)),
        ],
        out_specs=pl.BlockSpec((tile, Fout), lambda i: (i, 0)),
        compiler_params=pltpu.CompilerParams(dimension_semantics=("parallel",)),
    )(x, w1b, b1, w2b, b2)


# ----------------------------------------------------------------------------
# CGConv kernel (torch_geometric.nn.CGConv, aggr='mean'), gathered k-NN form:
#   out_i = x_i + (1/k) * sum_m sigmoid(Wf z_im + bf) * softplus(Ws z_im + bs),
#   z_im = [x_i, x_{nbr[i,m]}, e_{im}]
# Filter/softplus branches are fused into one [.,2C] matmul per term; the De=4
# edge contraction is done as 4 VPU broadcast-MACs (too small for the MXU).
# The destination-node axis is tiled via the grid and marked "parallel".
# ----------------------------------------------------------------------------
def cgconv_kernel(x_ref, xj_ref, e_ref, wa_ref, wb_ref, wc_ref, b_ref, o_ref):
    x = x_ref[...]                                          # [ti, C] f32
    ti, C = x.shape
    k = xj_ref.shape[0]
    De = e_ref.shape[-1]
    inv_k = 1.0 / k                                         # deg == k for a kNN graph

    # x_i contribution + bias (fused filter|softplus branches -> 2C lanes)
    ai = jnp.dot(x.astype(jnp.bfloat16), wa_ref[...],
                 preferred_element_type=jnp.float32) + b_ref[...]          # [ti, 2C]

    # x_j contribution: single MXU matmul over all k*ti gathered neighbours
    xj = xj_ref[...]                                                       # [k, ti, C]
    aj = jnp.dot(xj.reshape(k * ti, C).astype(jnp.bfloat16), wb_ref[...],
                 preferred_element_type=jnp.float32).reshape(k, ti, 2 * C)

    # edge contribution: K=De=4 -> VPU broadcast-MACs instead of a tiny MXU dot
    e = e_ref[...]                                                         # [k, ti, De]
    wc = wc_ref[...]                                                       # [De, 2C]
    ec = jnp.zeros((k, ti, 2 * C), jnp.float32)
    for d in range(De):
        ec = ec + e[:, :, d:d + 1] * wc[d, :]

    pre = aj + ec + ai[None, :, :]                                         # [k, ti, 2C]
    msg = jax.nn.sigmoid(pre[..., :C]) * jax.nn.softplus(pre[..., C:])     # [k, ti, C]
    agg = jnp.sum(msg, axis=0) * inv_k                                     # mean aggr
    o_ref[...] = (x + agg).astype(o_ref.dtype)


def cgconv(x, xj, e, wf, bf, ws, bs):
    N, C = x.shape
    k = xj.shape[0]
    De = e.shape[-1]

    # Fuse the filter/softplus branches: one weight slab of width 2C per z-term.
    wa = jnp.concatenate([wf[:C], ws[:C]], axis=1)                # x_i part  [C, 2C]
    wb = jnp.concatenate([wf[C:2 * C], ws[C:2 * C]], axis=1)      # x_j part  [C, 2C]
    wc = jnp.concatenate([wf[2 * C:], ws[2 * C:]], axis=1)        # edge part [De, 2C]
    b = jnp.concatenate([bf, bs], axis=1)                         # [1, 2C]
    wa_b = wa.astype(jnp.bfloat16)
    wb_b = wb.astype(jnp.bfloat16)

    # Tile over destination nodes; per-block VMEM ~ O(ti*k*2C) f32, safe for 64 MiB v7x.
    ti = _pick_row_tile(N, max_tile=256)
    grid = (N // ti,)
    # TODO(synk): for very large N, gather x_j / edge attrs inside the kernel via
    # PrefetchScalarGridSpec neighbour indices instead of host-side dense gathers.
    return pl.pallas_call(
        cgconv_kernel,
        out_shape=jax.ShapeDtypeStruct((N, C), jnp.float32),
        grid=grid,
        in_specs=[
            pl.BlockSpec((ti, C), lambda i: (i, 0)),
            pl.BlockSpec((k, ti, C), lambda i: (0, i, 0)),
            pl.BlockSpec((k, ti, De), lambda i: (0, i, 0)),
            pl.BlockSpec((C, 2 * C), lambda i: (0, 0)),
            pl.BlockSpec((C, 2 * C), lambda i: (0, 0)),
            pl.BlockSpec((De, 2 * C), lambda i: (0, 0)),
            pl.BlockSpec((1, 2 * C), lambda i: (0, 0)),
        ],
        out_specs=pl.BlockSpec((ti, C), lambda i: (i, 0)),
        compiler_params=pltpu.CompilerParams(dimension_semantics=("parallel",)),
    )(x, xj, e, wa_b, wb_b, wc, b)


# ----------------------------------------------------------------------------
# Global attention pooling kernel (torch_geometric GlobalAttention, nn=Identity):
#   gate_i = MLP(x_i); alpha = softmax(gate) per graph; out_g = sum_i alpha_i x_i
# Per-graph max shift (avoids exp-underflow 0/0), segmented sums on the VPU
# (G is tiny, so no M=G MXU matmul), EUP reciprocal for the final divide.
# ----------------------------------------------------------------------------
def attnpool_kernel(x_ref, w1_ref, b1_ref, w2_ref, b2_ref, oneh_ref, o_ref):
    x = x_ref[...]                                                        # [N, C]
    h = jnp.dot(x.astype(jnp.bfloat16), w1_ref[...],
                preferred_element_type=jnp.float32) + b1_ref[...]
    h = jnp.maximum(h, 0.0)
    gate = jnp.dot(h.astype(jnp.bfloat16), w2_ref[...],
                   preferred_element_type=jnp.float32) + b2_ref[...]       # [N, 1]

    B = oneh_ref[...]                                                      # [G, N]
    g_row = gate[:, 0][None, :]                                            # [1, N]
    # per-graph max shift (softmax numerics per segment, not global)
    gmax = jnp.max(jnp.where(B > 0, g_row, -jnp.inf), axis=1, keepdims=True)  # [G, 1]
    shift = jnp.sum(B * gmax, axis=0)[:, None]                             # [N, 1]
    w = jnp.exp(gate - shift)                                              # [N, 1]

    wx = w * x                                                             # [N, C]
    num = jnp.sum(B[:, :, None] * wx[None, :, :], axis=1)                  # [G, C]
    den = jnp.sum(B * w[:, 0][None, :], axis=1, keepdims=True)             # [G, 1]
    o_ref[...] = (num * pl.reciprocal(den, approx=True)).astype(o_ref.dtype)


def attn_pool(x, oneh, gate_params):
    N, C = x.shape
    G = oneh.shape[0]
    w1 = gate_params["w1"].astype(jnp.bfloat16)
    w2 = gate_params["w2"].astype(jnp.bfloat16)
    args = (x, w1, gate_params["b1"], w2, gate_params["b2"], oneh)
    return pl.pallas_call(
        attnpool_kernel,
        out_shape=jax.ShapeDtypeStruct((G, C), jnp.float32),
        in_specs=[_full_spec(a.shape) for a in args],
        out_specs=_full_spec((G, C)),
    )(*args)


# ----------------------------------------------------------------------------
# Plain-JAX glue: kNN indices, gathered PPF edge features, subsampling.
# (No dense [N,N] adjacency / [N,N,4] edge tensors are materialized anymore.)
# ----------------------------------------------------------------------------
def knn_indices(pos, batch, k):
    N = pos.shape[0]
    d2 = jnp.sum((pos[:, None, :] - pos[None, :, :]) ** 2, axis=-1)
    same = batch[:, None] == batch[None, :]
    d2 = jnp.where(same, d2, jnp.inf)
    d2 = jnp.where(jnp.eye(N, dtype=bool), jnp.inf, d2)
    _, nbr = jax.lax.top_k(-d2, k)                                         # [N, k]
    return nbr


def ppf_gathered(pos, norm, nbr):
    # 'ppf' edge features only over the k gathered neighbours -> [k, N, 4]
    pj = pos[nbr]                                                          # [N, k, 3]
    nj = norm[nbr]                                                         # [N, k, 3]
    d = pj - pos[:, None, :]                                               # pos_j - pos_i
    dist = jnp.linalg.norm(d, axis=-1)

    def angle(a, b):
        cross = jnp.cross(a, b)
        return jnp.arctan2(jnp.linalg.norm(cross, axis=-1), jnp.sum(a * b, axis=-1))

    ni = jnp.broadcast_to(norm[:, None, :], d.shape)
    e = jnp.stack([dist, angle(ni, d), angle(nj, d), angle(ni, nj)], axis=-1)  # [N, k, 4]
    return jnp.transpose(e, (1, 0, 2)).astype(jnp.float32)                 # [k, N, 4]


# ----------------------------------------------------------------------------
# Model parameters + forward (eval mode: dropout = identity, BN uses running stats)
# ----------------------------------------------------------------------------
def init_params(key, n_in, nh, nout, depth, dim_edge):
    keys = iter(jax.random.split(key, 64))

    def W(shape, scale=0.2):
        return (scale * jax.random.normal(next(keys), shape)).astype(jnp.float32)

    p = {
        "lin_in": dict(w1=W((n_in, 64)), b1=W((1, 64), 0.05),
                       w2=W((64, nh)), b2=W((1, nh), 0.05)),
        "convs": [],
        "gate": dict(w1=W((nh, nh)), b1=W((1, nh), 0.05),
                     w2=W((nh, 1)), b2=W((1, 1), 0.05)),
        "lin_out": dict(w1=W((nh, nh)), b1=W((1, nh), 0.05),
                        w2=W((nh, nout)), b2=W((1, nout), 0.05)),
    }
    zc = 2 * nh + dim_edge
    for _ in range(depth):
        p["convs"].append(dict(wf=W((zc, nh)), bf=W((1, nh), 0.05),
                               ws=W((zc, nh)), bs=W((1, nh), 0.05)))
    return p


def model_forward(p, x, pos, norm, batch, num_graphs, depth, ratios):
    # lin_in: Linear -> BN -> ReLU -> Linear -> BN -> ReLU.  Eval-mode BN with fresh
    # running stats is a pure scale, folded into the linear weights/biases here.
    x = mlp2(x,
             p["lin_in"]["w1"] * BN_SCALE, p["lin_in"]["b1"] * BN_SCALE,
             p["lin_in"]["w2"] * BN_SCALE, p["lin_in"]["b2"] * BN_SCALE,
             relu_last=True)

    cur_pos, cur_norm, cur_batch = pos, norm, batch
    N = x.shape[0]
    for i in range(depth):
        # TODO(synk): farthest-point sampling + radius-graph construction of SAModule
        # are data-dependent graph ops with no clean Pallas equivalent; use deterministic
        # strided subsampling + kNN adjacency as a structural stand-in.
        stride = int(round(1.0 / ratios[i]))
        idx = np.arange(0, N, stride)
        x, cur_pos = x[idx], cur_pos[idx]
        cur_norm, cur_batch = cur_norm[idx], cur_batch[idx]
        N = x.shape[0]
        per_graph = N // num_graphs
        k = max(1, min(4, per_graph - 1))
        nbr = knn_indices(cur_pos, cur_batch, k)                 # [N, k] neighbour ids
        e = ppf_gathered(cur_pos, cur_norm, nbr)                 # [k, N, 4] 'ppf' edges
        xj = jnp.transpose(x[nbr], (1, 0, 2))                    # [k, N, C] gathered x_j
        c = p["convs"][i]
        x = cgconv(x, xj, e, c["wf"], c["bf"], c["ws"], c["bs"])

    oneh = jax.nn.one_hot(cur_batch, num_graphs, dtype=jnp.float32).T     # [G, N]
    pooled = attn_pool(x, oneh, p["gate"])                                # GlobalAttention pool

    # F.dropout in eval mode is identity.
    # lin_out: Linear -> BN -> ReLU -> Linear (no act, no BN on last layer)
    out = mlp2(pooled,
               p["lin_out"]["w1"] * BN_SCALE, p["lin_out"]["b1"] * BN_SCALE,
               p["lin_out"]["w2"], p["lin_out"]["b2"],
               relu_last=False)
    return out


if __name__ == "__main__":
    N, n_in, nh, nout, depth = 32, 4, 16, 8, 3
    num_graphs = 2
    ratios = [0.5, 0.5, 0.5]
    dim_edge = 4  # EDGE_DIM['ppf'](nh)

    key = jax.random.PRNGKey(0)
    kp, kx, kpos, knrm = jax.random.split(key, 4)
    params = init_params(kp, n_in, nh, nout, depth, dim_edge)

    x = jax.random.normal(kx, (N, n_in), jnp.float32)
    pos = jax.random.normal(kpos, (N, 3), jnp.float32)
    norm = jax.random.normal(knrm, (N, 3), jnp.float32)
    norm = norm / jnp.linalg.norm(norm, axis=-1, keepdims=True)
    batch = jnp.repeat(jnp.arange(num_graphs), N // num_graphs)

    out = model_forward(params, x, pos, norm, batch, num_graphs, depth, ratios)
    out = jax.block_until_ready(out)
    assert out.shape == (num_graphs, nout), out.shape
    assert bool(jnp.all(jnp.isfinite(out)))
    print("KERNEL_OK")
</pallas_src>

<mosaic_0001>
module attributes {stable_mosaic.version = 11 : i64} {
  func.func @mlp2_kernel(%arg0: i32, %arg1: memref<32x4xf32, #tpu.memory_space<vmem>>, %arg2: memref<4x128xbf16, #tpu.memory_space<vmem>>, %arg3: memref<1x128xf32, #tpu.memory_space<vmem>>, %arg4: memref<128x16xbf16, #tpu.memory_space<vmem>>, %arg5: memref<1x16xf32, #tpu.memory_space<vmem>>, %arg6: memref<32x16xf32, #tpu.memory_space<vmem>>) attributes {dimension_semantics = [#tpu.dimension_semantics<parallel>], iteration_bounds = array<i64: 1>, scalar_prefetch = 0 : i64, scratch_operands = 0 : i64, tpu.core_type = #tpu.core_type<tc>, window_params = [{transform_indices = @transform_0, window_bounds = array<i64: 32, 4>}, {pipeline_mode = #tpu.pipeline_mode<synchronous>, transform_indices = @transform_1, window_bounds = array<i64: 4, 128>}, {pipeline_mode = #tpu.pipeline_mode<synchronous>, transform_indices = @transform_2, window_bounds = array<i64: 1, 128>}, {pipeline_mode = #tpu.pipeline_mode<synchronous>, transform_indices = @transform_3, window_bounds = array<i64: 128, 16>}, {pipeline_mode = #tpu.pipeline_mode<synchronous>, transform_indices = @transform_4, window_bounds = array<i64: 1, 16>}, {transform_indices = @transform_5, window_bounds = array<i64: 32, 16>}]} {
    %c0 = arith.constant 0 : index
    %c0_0 = arith.constant 0 : index
    %0 = vector.load %arg1[%c0, %c0_0] : memref<32x4xf32, #tpu.memory_space<vmem>>, vector<32x4xf32>
    %1 = arith.truncf %0 : vector<32x4xf32> to vector<32x4xbf16>
    %c0_1 = arith.constant 0 : index
    %c0_2 = arith.constant 0 : index
    %2 = vector.load %arg2[%c0_1, %c0_2] : memref<4x128xbf16, #tpu.memory_space<vmem>>, vector<4x128xbf16>
    %cst = arith.constant dense<0.000000e+00> : vector<32x128xf32>
    %3 = tpu.matmul %1, %2, %cst {dimension_numbers = #tpu.dot_dimension_numbers<[1], [0], [0], [1], [0, 0, 1, 1], [], []>} : vector<32x4xbf16>, vector<4x128xbf16>, vector<32x128xf32> -> vector<32x128xf32>
    %c0_3 = arith.constant 0 : index
    %c0_4 = arith.constant 0 : index
    %4 = vector.load %arg3[%c0_3, %c0_4] : memref<1x128xf32, #tpu.memory_space<vmem>>, vector<1x128xf32>
    %5 = vector.broadcast %4 : vector<1x128xf32> to vector<32x128xf32>
    %6 = arith.addf %3, %5 : vector<32x128xf32>
    %cst_5 = arith.constant 0.000000e+00 : f32
    %7 = vector.broadcast %cst_5 : f32 to vector<32x128xf32>
    %8 = arith.maximumf %6, %7 : vector<32x128xf32>
    %9 = arith.truncf %8 : vector<32x128xf32> to vector<32x128xbf16>
    %c0_6 = arith.constant 0 : index
    %c0_7 = arith.constant 0 : index
    %10 = vector.load %arg4[%c0_6, %c0_7] : memref<128x16xbf16, #tpu.memory_space<vmem>>, vector<128x16xbf16>
    %cst_8 = arith.constant dense<0.000000e+00> : vector<32x16xf32>
    %11 = tpu.matmul %9, %10, %cst_8 {dimension_numbers = #tpu.dot_dimension_numbers<[1], [0], [0], [1], [0, 0, 1, 1], [], []>} : vector<32x128xbf16>, vector<128x16xbf16>, vector<32x16xf32> -> vector<32x16xf32>
    %c0_9 = arith.constant 0 : index
    %c0_10 = arith.constant 0 : index
    %12 = vector.load %arg5[%c0_9, %c0_10] : memref<1x16xf32, #tpu.memory_space<vmem>>, vector<1x16xf32>
    %13 = vector.broadcast %12 : vector<1x16xf32> to vector<32x16xf32>
    %14 = arith.addf %11, %13 : vector<32x16xf32>
    %cst_11 = arith.constant 0.000000e+00 : f32
    %15 = vector.broadcast %cst_11 : f32 to vector<32x16xf32>
    %16 = arith.maximumf %14, %15 : vector<32x16xf32>
    %c0_12 = arith.constant 0 : index
    %c0_13 = arith.constant 0 : index
    %17 = vector.load %arg6[%c0_12, %c0_13] : memref<32x16xf32, #tpu.memory_space<vmem>>, vector<32x16xf32>
    tpu.vector_store %arg6[%c0_12, %c0_13], %16 {strides = array<i32>} : memref<32x16xf32, #tpu.memory_space<vmem>>, vector<32x16xf32>,
    return
  }
  func.func @transform_0(%arg0: i32) -> (i32, i32) {
    %c0_i32 = arith.constant 0 : i32
    %c0_i32_0 = arith.constant 0 : i32
    return %arg0, %c0_i32 : i32, i32
  }
  func.func @transform_1(%arg0: i32) -> (i32, i32) {
    %c0_i32 = arith.constant 0 : i32
    %c0_i32_0 = arith.constant 0 : i32
    %c0_i32_1 = arith.constant 0 : i32
    return %c0_i32, %c0_i32_0 : i32, i32
  }
  func.func @transform_2(%arg0: i32) -> (i32, i32) {
    %c0_i32 = arith.constant 0 : i32
    %c0_i32_0 = arith.constant 0 : i32
    %c0_i32_1 = arith.constant 0 : i32
    return %c0_i32, %c0_i32_0 : i32, i32
  }
  func.func @transform_3(%arg0: i32) -> (i32, i32) {
    %c0_i32 = arith.constant 0 : i32
    %c0_i32_0 = arith.constant 0 : i32
    %c0_i32_1 = arith.constant 0 : i32
    return %c0_i32, %c0_i32_0 : i32, i32
  }
  func.func @transform_4(%arg0: i32) -> (i32, i32) {
    %c0_i32 = arith.constant 0 : i32
    %c0_i32_0 = arith.constant 0 : i32
    %c0_i32_1 = arith.constant 0 : i32
    return %c0_i32, %c0_i32_0 : i32, i32
  }
  func.func @transform_5(%arg0: i32) -> (i32, i32) {
    %c0_i32 = arith.constant 0 : i32
    %c0_i32_0 = arith.constant 0 : i32
    return %arg0, %c0_i32 : i32, i32
  }
}

</mosaic_0001>

<llo_original>
// kernel: tpu_custom_call.1
$region0: #{tpu_custom_call.1}
  #allocation0 [shape = 'u32[]', space=smem, size = 0x4, offset = 0x4, fixed_abs, tag = 'smem constant byte address 0x4 - core index']
  #allocation1 [shape = 'u32[144,128]{1,0:T(1,128)}', space=vmem, size = 0x12000, scoped, tag = 'internal scratch']
  %s0 = inlined_call_operand.vmem [shape: f32[32,4], index: 0, kind: input, shape index: {}]
  %s1 = inlined_call_operand.vmem [shape: bf16[4,128], index: 1, kind: input, shape index: {}]
  %s2 = inlined_call_operand.vmem [shape: f32[1,128], index: 2, kind: input, shape index: {}]
  %s3 = inlined_call_operand.vmem [shape: bf16[128,16], index: 3, kind: input, shape index: {}]
  %s4 = inlined_call_operand.vmem [shape: f32[1,16], index: 4, kind: input, shape index: {}]
  %s5 = inlined_call_operand.vmem [shape: f32[32,16], index: 5, kind: output, shape index: {}]
  %s6 = sld [smem:[#allocation0]]
  $region30: #{tpu_custom_call.1} parent=0
    _
  %s8 = ssub.s32 1, %s6
  %s9 = scalar_select 0, %s8, %s6
  // Predicated region
  $region2: #{tpu_custom_call.1} parent=0 // pred_check
    _
  $region3: #{tpu_custom_call.1} parent=0 // pred_check_branch
    %11 = sbr.rel (0) target = $region5
  $region4: #{tpu_custom_call.1} parent=0 // pred_region
    _
  $region5: #{tpu_custom_call.1} parent=0 // pred_fallthru
    _
  // Predicated region
  $region6: #{tpu_custom_call.1} parent=0 // pred_check
    _
  $region7: #{tpu_custom_call.1} parent=0 // pred_check_branch
    %13 = sbr.rel (0) target = $region9
  $region8: #{tpu_custom_call.1} parent=0 // pred_region
    _
  $region9: #{tpu_custom_call.1} parent=0 // pred_fallthru
    _
  // Predicated region
  $region10: #{tpu_custom_call.1} parent=0 // pred_check
    _
  $region11: #{tpu_custom_call.1} parent=0 // pred_check_branch
    %15 = sbr.rel (0) target = $region13
  $region12: #{tpu_custom_call.1} parent=0 // pred_region
    _
  $region13: #{tpu_custom_call.1} parent=0 // pred_fallthru
    _
  // Predicated region
  $region14: #{tpu_custom_call.1} parent=0 // pred_check
    _
  $region15: #{tpu_custom_call.1} parent=0 // pred_check_branch
    %17 = sbr.rel (0) target = $region17
  $region16: #{tpu_custom_call.1} parent=0 // pred_region
    _
  $region17: #{tpu_custom_call.1} parent=0 // pred_fallthru
    _
  // Predicated region
  $region18: #{tpu_custom_call.1} parent=0 // pred_check
    _
  $region19: #{tpu_custom_call.1} parent=0 // pred_check_branch
    %19 = sbr.rel (0) target = $region21
  $region20: #{tpu_custom_call.1} parent=0 // pred_region
    _
  $region21: #{tpu_custom_call.1} parent=0 // pred_fallthru
    _
  %v21 = vld [vmem:[%s0] sm:$0xff]
  %v22 = vld [vmem:[%s0 + $0x8] sm:$0xff]
  %v23 = vld [vmem:[%s0 + $0x10] sm:$0xff]
  %v24 = vld [vmem:[%s0 + $0x18] sm:$0xff]
  %v25 = vpack.c.bf16 %v22, %v21
  %v26 = vpack.c.bf16 %v24, %v23
  %v27 = vld [vmem:[%s1] sm:$0x3]
  %v28 = vld [vmem:[%s2] sm:$0x1]
  %v30 = vlaneseq
  %v31 = vshrl.u32 %v30, 7
  %v32 = vsub.s32 0, %v31
  %v33 = vrot.slane %v28, %v32
  %vm35 = vcmask 31744
  %v37 = vsel %vm35, %v25, 0
  %v40 = vsel %vm35, %v26, 0
  %vm42 = vcmask 1041408
  %v44 = vsel %vm42, %v27, 0
  %46 = vmatprep.subr.bf16.mxu0 0
  %47 = vmatpush1.bf16.msra.mxu0 0
  %48 = vmatprep.subr.bf16.mxu0 0
  %49 = vmatpush1.bf16.msra.mxu0 0
  %50 = vmatprep.subr.bf16.mxu0 0
  %51 = vmatpush1.bf16.msra.mxu0 0
  %52 = vmatprep.subr.bf16.mxu0 0
  %53 = vmatpush1.bf16.msra.mxu0 0
  %54 = vmatprep.subr.bf16.mxu0 0
  %55 = vmatpush1.bf16.msra.mxu0 0
  %56 = vmatprep.subr.bf16.mxu0 0
  %57 = vmatpush1.bf16.msra.mxu0 0
  %58 = vmatprep.subr.bf16.mxu0 0
  %59 = vmatpush1.bf16.msra.mxu0 0
  %60 = vmatprep.subr.bf16.mxu0 0
  %61 = vmatpush1.bf16.msra.mxu0 %v44
  %62 = vmatprep.subr.bf16.mxu0 0
  %63 = vmatpush2.bf16.msra.mxu0 0
  %64 = vmatprep.subr.bf16.mxu0 0
  %65 = vmatpush2.bf16.msra.mxu0 0
  %66 = vmatprep.subr.bf16.mxu0 0
  %67 = vmatpush2.bf16.msra.mxu0 0
  %68 = vmatprep.subr.bf16.mxu0 0
  %69 = vmatpush2.bf16.msra.mxu0 0
  %70 = vmatprep.subr.bf16.mxu0 0
  %71 = vmatpush2.bf16.msra.mxu0 0
  %72 = vmatprep.subr.bf16.mxu0 0
  %73 = vmatpush2.bf16.msra.mxu0 0
  %74 = vmatprep.subr.bf16.mxu0 0
  %75 = vmatpush2.bf16.msra.mxu0 0
  %76 = vmatprep.subr.bf16.mxu0 0
  %77 = vmatpush2.bf16.msra.mxu0 0
  %78 = vmatprep.mubr.bf16.mxu0 0
  %79 = vmatmul.mubr.bf16.gmra.mxu0 %v37
  %v80 = vpop.f32.mrf.mxu0
  %v81 = vadd.f32 %v33, %v80
  %v82 = vpop.f32.mrf.mxu0
  %v83 = vpop.f32.mrf.mxu0
  %v84 = vadd.f32 %v33, %v83
  %v85 = vpop.f32.mrf.mxu0
  %86 = vmatprep.mubr.bf16.mxu0 0
  %87 = vmatmul.mubr.bf16.gmra.mxu0 %v40
  %v88 = vpop.f32.mrf.mxu0
  %v89 = vadd.f32 %v33, %v88
  %v90 = vpop.f32.mrf.mxu0
  %v91 = vpop.f32.mrf.mxu0
  %v92 = vadd.f32 %v33, %v91
  %v93 = vpop.f32.mrf.mxu0
  %94 = vdwg.mxu0
  %v95 = vmax.f32 %v81, 0.0
  %v96 = vmax.f32 %v84, 0.0
  %v97 = vmax.f32 %v89, 0.0
  %v98 = vmax.f32 %v92, 0.0
  %v99 = vpack.c.bf16 %v96, %v95
  %v100 = vpack.c.bf16 %v98, %v97
  %v101 = vld [vmem:[%s3] sm:$0xf]
  %v102 = vld [vmem:[%s3 + $0x4] sm:$0xf]
  %v103 = vld [vmem:[%s3 + $0x8] sm:$0xf]
  %v104 = vld [vmem:[%s3 + $0xc] sm:$0xf]
  %v105 = vld [vmem:[%s3 + $0x10] sm:$0xf]
  %v106 = vld [vmem:[%s3 + $0x14] sm:$0xf]
  %v107 = vld [vmem:[%s3 + $0x18] sm:$0xf]
  %v108 = vld [vmem:[%s3 + $0x1c] sm:$0xf]
  %v109 = vld [vmem:[%s3 + $0x20] sm:$0xf]
  %v110 = vld [vmem:[%s3 + $0x24] sm:$0xf]
  %v111 = vld [vmem:[%s3 + $0x28] sm:$0xf]
  %v112 = vld [vmem:[%s3 + $0x2c] sm:$0xf]
  %v113 = vld [vmem:[%s3 + $0x30] sm:$0xf]
  %v114 = vld [vmem:[%s3 + $0x34] sm:$0xf]
  %v115 = vld [vmem:[%s3 + $0x38] sm:$0xf]
  %v116 = vld [vmem:[%s3 + $0x3c] sm:$0xf]
  %v117 = vld [vmem:[%s4] sm:$0x1]
  %v119 = vlaneseq
  %v120 = vshrl.u32 %v119, 7
  %v121 = vsub.s32 0, %v120
  %v122 = vrot.slane %v117, %v121
  %v140 = vunpack.c.l.b16 %v101
  %v141 = vunpack.c.l.b16 %v102
  %v142 = vunpack.c.l.b16 %v103
  %v143 = vunpack.c.l.b16 %v104
  %v144 = vunpack.c.l.b16 %v105
  %v145 = vunpack.c.l.b16 %v106
  %v146 = vunpack.c.l.b16 %v107
  %v147 = vunpack.c.l.b16 %v108
  %v148 = vunpack.c.l.b16 %v109
  %v149 = vunpack.c.l.b16 %v110
  %v150 = vunpack.c.l.b16 %v111
  %v151 = vunpack.c.l.b16 %v112
  %v152 = vunpack.c.l.b16 %v113
  %v153 = vunpack.c.l.b16 %v114
  %v154 = vunpack.c.l.b16 %v115
  %v155 = vunpack.c.l.b16 %v116
  %v156 = vpack.c.b16 %v141, %v140
  %v157 = vpack.c.b16 %v143, %v142
  %v158 = vpack.c.b16 %v145, %v144
  %v159 = vpack.c.b16 %v147, %v146
  %v160 = vpack.c.b16 %v149, %v148
  %v161 = vpack.c.b16 %v151, %v150
  %v162 = vpack.c.b16 %v153, %v152
  %v163 = vpack.c.b16 %v155, %v154
  %172 = vmatprep.subr.bf16.mxu0 0
  %173 = vmatpush1.bf16.msra.mxu0 %v163
  %174 = vmatprep.subr.bf16.mxu0 0
  %175 = vmatpush1.bf16.msra.mxu0 %v162
  %176 = vmatprep.subr.bf16.mxu0 0
  %177 = vmatpush1.bf16.msra.mxu0 %v161
  %178 = vmatprep.subr.bf16.mxu0 0
  %179 = vmatpush1.bf16.msra.mxu0 %v160
  %180 = vmatprep.subr.bf16.mxu0 0
  %181 = vmatpush1.bf16.msra.mxu0 %v159
  %182 = vmatprep.subr.bf16.mxu0 0
  %183 = vmatpush1.bf16.msra.mxu0 %v158
  %184 = vmatprep.subr.bf16.mxu0 0
  %185 = vmatpush1.bf16.msra.mxu0 %v157
  %186 = vmatprep.subr.bf16.mxu0 0
  %187 = vmatpush1.bf16.msra.mxu0 %v156
  %188 = vmatprep.subr.bf16.mxu0 0
  %189 = vmatpush2.bf16.msra.mxu0 0
  %190 = vmatprep.subr.bf16.mxu0 0
  %191 = vmatpush2.bf16.msra.mxu0 0
  %192 = vmatprep.subr.bf16.mxu0 0
  %193 = vmatpush2.bf16.msra.mxu0 0
  %194 = vmatprep.subr.bf16.mxu0 0
  %195 = vmatpush2.bf16.msra.mxu0 0
  %196 = vmatprep.subr.bf16.mxu0 0
  %197 = vmatpush2.bf16.msra.mxu0 0
  %198 = vmatprep.subr.bf16.mxu0 0
  %199 = vmatpush2.bf16.msra.mxu0 0
  %200 = vmatprep.subr.bf16.mxu0 0
  %201 = vmatpush2.bf16.msra.mxu0 0
  %202 = vmatprep.subr.bf16.mxu0 0
  %203 = vmatpush2.bf16.msra.mxu0 0
  %204 = vmatprep.mubr.bf16.mxu0 0
  %205 = vmatmul.mubr.bf16.gmra.mxu0 %v99
  %v206 = vpop.f32.mrf.mxu0
  %v207 = vadd.f32 %v122, %v206
  %v208 = vpop.f32.mrf.mxu0
  %v209 = vpop.f32.mrf.mxu0
  %v210 = vadd.f32 %v122, %v209
  %v211 = vpop.f32.mrf.mxu0
  %212 = vmatprep.mubr.bf16.mxu0 0
  %213 = vmatmul.mubr.bf16.gmra.mxu0 %v100
  %v214 = vpop.f32.mrf.mxu0
  %v215 = vadd.f32 %v122, %v214
  %v216 = vpop.f32.mrf.mxu0
  %v217 = vpop.f32.mrf.mxu0
  %v218 = vadd.f32 %v122, %v217
  %v219 = vpop.f32.mrf.mxu0
  %220 = vdwg.mxu0
  %v221 = vmax.f32 %v207, 0.0
  %v222 = vmax.f32 %v210, 0.0
  %v223 = vmax.f32 %v215, 0.0
  %v224 = vmax.f32 %v218, 0.0
  %vm225 = vcmask 130048
  %226 = vst.msk [vmem:[%s5] sm:$0xff] %vm225, %v221
  %227 = vst.msk [vmem:[%s5 + $0x8] sm:$0xff] %vm225, %v222
  %228 = vst.msk [vmem:[%s5 + $0x10] sm:$0xff] %vm225, %v223
  %229 = vst.msk [vmem:[%s5 + $0x18] sm:$0xff] %vm225, %v224
  // Predicated region
  $region22: #{tpu_custom_call.1} parent=0 // pred_check
    _
  $region23: #{tpu_custom_call.1} parent=0 // pred_check_branch
    %231 = sbr.rel (0) target = $region25
  $region24: #{tpu_custom_call.1} parent=0 // pred_region
    _
  $region25: #{tpu_custom_call.1} parent=0 // pred_fallthru
    _
  // Predicated region
  $region26: #{tpu_custom_call.1} parent=0 // pred_check
    _
  $region27: #{tpu_custom_call.1} parent=0 // pred_check_branch
    %233 = sbr.rel (0) target = $region29
  $region28: #{tpu_custom_call.1} parent=0 // pred_region
    _
  $region29: #{tpu_custom_call.1} parent=0 // pred_fallthru
    _

</llo_original>
